<compile_context>
chip_gen: v6e
topology: v6e:2x2x1
jax: 0.10.0
libtpu: 0.0.40
codegen_flags: <defaults>
</compile_context>

<pallas_src>
import jax
import jax.numpy as jnp
from jax.experimental import pallas as pl
from jax.experimental.pallas import tpu as pltpu

KH = KW = 3
C_IN = 3
C_OUT = 64
K_REAL = KH * KW * C_IN        # 27 conv taps
K_PAD = 32                     # 27 taps + 1 bias column + 4 zero rows
BIAS_COL = K_REAL              # constant-1 column carrying the bias


def conv3x3_relu_kernel(p_ref, w_ref, o_ref):
    # p_ref: (1, K_PAD, TILE)  bf16  im2col patches (K-major, lane-dense)
    # w_ref: (C_OUT, K_PAD)    bf16  weights, bias folded into column BIAS_COL
    # o_ref: (1, C_OUT, TILE)  bf16  conv + bias + ReLU output tile (NCHW-flat)
    acc = jnp.dot(w_ref[...], p_ref[0],                 # (C_OUT, TILE), f32 acc
                  preferred_element_type=jnp.float32)
    o_ref[0] = jnp.maximum(acc, 0.0).astype(o_ref.dtype)


def _pick_spatial_tile(hw_pad, n_batch, max_tile=12544):
    """Largest multiple-of-128 divisor of hw_pad (capped), keeping >=2 grid steps."""
    assert hw_pad % 128 == 0
    m = hw_pad // 128
    cap = min(m, max(1, max_tile // 128))
    if n_batch == 1 and m >= 2:
        cap = min(cap, m // 2)      # >= 2 grid steps so v7x's two TCs both get work
    best = 1
    for cand in range(1, cap + 1):
        if m % cand == 0:
            best = cand
    return best * 128


def _vmem_limit_bytes(tile):
    # 2x-buffered patch & output blocks + f32 accumulator temp + weights, 2x headroom;
    # capped at 48 MiB so the request always fits v7x's 64 MiB physical VMEM.
    per_step = tile * (2 * K_PAD * 2 + 2 * C_OUT * 2 + C_OUT * 4) + C_OUT * K_PAD * 2
    return int(min(max(2 * per_step, 32 << 20), 48 << 20))


def vgg19_forward(x_nchw, w_oihw, bias, spatial_tile=None, out_dtype=jnp.bfloat16):
    """Equivalent of VGG19.forward(X): returns [h_relu1] in NCHW layout."""
    N, Cin, H, W = x_nchw.shape
    Cout = w_oihw.shape[0]
    assert Cin == C_IN and Cout == C_OUT
    HW = H * W
    HW_pad = ((HW + 127) // 128) * 128                          # lane-dense output
    tile = _pick_spatial_tile(HW_pad, N) if spatial_tile is None else spatial_tile
    assert HW_pad % tile == 0 and tile % 128 == 0, (HW_pad, tile)

    # ---- wrapper glue: K-major im2col straight from NCHW (no channel transpose) ----
    xb = x_nchw.astype(jnp.bfloat16)
    xp = jnp.pad(xb, ((0, 0), (0, 0), (1, 1), (1, 1)))          # "same" halo
    taps = [xp[:, :, kh:kh + H, kw:kw + W]                      # 9 x (N, 3, H, W)
            for kh in range(KH) for kw in range(KW)]
    patches = jnp.stack(taps, axis=1).reshape(N, K_REAL, HW)    # k = (kh*3+kw)*3 + c
    ones = jnp.ones((N, 1, HW), jnp.bfloat16)                   # bias column
    zeros = jnp.zeros((N, K_PAD - K_REAL - 1, HW), jnp.bfloat16)
    patches = jnp.concatenate([patches, ones, zeros], axis=1)   # (N, 32, HW)
    if HW_pad != HW:
        patches = jnp.pad(patches, ((0, 0), (0, 0), (0, HW_pad - HW)))

    w_mat = jnp.transpose(w_oihw, (0, 2, 3, 1)).reshape(Cout, K_REAL)
    w_mat = jnp.concatenate(
        [w_mat, bias.reshape(Cout, 1),
         jnp.zeros((Cout, K_PAD - K_REAL - 1), w_mat.dtype)], axis=1)
    w_mat = w_mat.astype(jnp.bfloat16)                          # (64, 32)

    # NOTE: if xprof ever shows exposed input DMA, pipeline_mode=pl.Buffered(3)
    # on the patch BlockSpec is the cheap next knob to sweep.
    out_flat = pl.pallas_call(
        conv3x3_relu_kernel,
        out_shape=jax.ShapeDtypeStruct((N, Cout, HW_pad), jnp.bfloat16),
        grid_spec=pltpu.PrefetchScalarGridSpec(
            num_scalar_prefetch=0,
            grid=(N, HW_pad // tile),
            in_specs=[
                pl.BlockSpec((1, K_PAD, tile), lambda n, s: (n, 0, s)),
                pl.BlockSpec((Cout, K_PAD), lambda n, s: (0, 0)),
            ],
            out_specs=pl.BlockSpec((1, Cout, tile), lambda n, s: (n, 0, s)),
        ),
        compiler_params=pltpu.CompilerParams(
            dimension_semantics=("parallel", "parallel"),
            vmem_limit_bytes=_vmem_limit_bytes(tile)),
    )(patches, w_mat)

    h_relu1 = out_flat[:, :, :HW].reshape(N, Cout, H, W).astype(out_dtype)
    return [h_relu1]


if __name__ == "__main__":
    key = jax.random.PRNGKey(0)
    kx, kw, kb = jax.random.split(key, 3)

    # Small deterministic inputs consistent with the module (NCHW, 3 channels).
    x = jax.random.normal(kx, (2, C_IN, 16, 16), dtype=jnp.float32)
    # TODO(synk): pretrained torchvision VGG19 weights cannot be loaded
    # in-script; deterministic synthetic weights stand in for features[0].
    w = jax.random.normal(kw, (C_OUT, C_IN, KH, KW), dtype=jnp.float32) * 0.1
    b = jax.random.normal(kb, (C_OUT,), dtype=jnp.float32) * 0.1

    # spatial_tile=128 forces a (N=2, S=2) grid so the multi-tile path is exercised.
    out = vgg19_forward(x, w, b, spatial_tile=128)
    h_relu1 = jax.block_until_ready(out[0])
    assert h_relu1.shape == (2, C_OUT, 16, 16)

    # Reference with the same bf16 quantization of inputs/weights/bias, f32 math.
    xq = x.astype(jnp.bfloat16).astype(jnp.float32)
    wq = w.astype(jnp.bfloat16).astype(jnp.float32)
    bq = b.astype(jnp.bfloat16).astype(jnp.float32)
    ref = jax.lax.conv_general_dilated(
        xq, wq, window_strides=(1, 1), padding="SAME",
        dimension_numbers=("NCHW", "OIHW", "NCHW"))
    ref = jnp.maximum(ref + bq[None, :, None, None], 0.0)
    err = jnp.max(jnp.abs(h_relu1.astype(jnp.float32) - ref))
    assert err < 2e-2, err

    print("KERNEL_OK")
</pallas_src>

<mosaic_0001>
module attributes {stable_mosaic.version = 11 : i64} {
  func.func @conv3x3_relu_kernel(%arg0: i32, %arg1: i32, %arg2: memref<1x32x128xbf16, #tpu.memory_space<vmem>>, %arg3: memref<64x32xbf16, #tpu.memory_space<vmem>>, %arg4: memref<1x64x128xbf16, #tpu.memory_space<vmem>>) attributes {dimension_semantics = [#tpu.dimension_semantics<parallel>, #tpu.dimension_semantics<parallel>], iteration_bounds = array<i64: 2, 2>, scalar_prefetch = 0 : i64, scratch_operands = 0 : i64, tpu.core_type = #tpu.core_type<tc>, window_params = [{transform_indices = @transform_0, window_bounds = array<i64: 1, 32, 128>}, {pipeline_mode = #tpu.pipeline_mode<synchronous>, transform_indices = @transform_1, window_bounds = array<i64: 64, 32>}, {transform_indices = @transform_2, window_bounds = array<i64: 1, 64, 128>}]} {
    %c0 = arith.constant 0 : index
    %c0_0 = arith.constant 0 : index
    %0 = vector.load %arg3[%c0, %c0_0] : memref<64x32xbf16, #tpu.memory_space<vmem>>, vector<64x32xbf16>
    %c0_1 = arith.constant 0 : index
    %c0_2 = arith.constant 0 : index
    %c0_3 = arith.constant 0 : index
    %1 = vector.load %arg2[%c0_1, %c0_2, %c0_3] : memref<1x32x128xbf16, #tpu.memory_space<vmem>>, vector<1x32x128xbf16>
    %2 = vector.shape_cast %1 : vector<1x32x128xbf16> to vector<32x128xbf16>
    %cst = arith.constant dense<0.000000e+00> : vector<64x128xf32>
    %3 = tpu.matmul %0, %2, %cst {dimension_numbers = #tpu.dot_dimension_numbers<[1], [0], [0], [1], [0, 0, 1, 1], [], []>} : vector<64x32xbf16>, vector<32x128xbf16>, vector<64x128xf32> -> vector<64x128xf32>
    %cst_4 = arith.constant 0.000000e+00 : f32
    %4 = vector.broadcast %cst_4 : f32 to vector<64x128xf32>
    %5 = arith.maximumf %3, %4 : vector<64x128xf32>
    %6 = arith.truncf %5 : vector<64x128xf32> to vector<64x128xbf16>
    %c0_5 = arith.constant 0 : index
    %c0_6 = arith.constant 0 : index
    %c0_7 = arith.constant 0 : index
    %7 = vector.load %arg4[%c0_5, %c0_6, %c0_7] : memref<1x64x128xbf16, #tpu.memory_space<vmem>>, vector<1x64x128xbf16>
    %8 = vector.shape_cast %7 : vector<1x64x128xbf16> to vector<64x128xbf16>
    %9 = vector.shape_cast %6 : vector<64x128xbf16> to vector<1x64x128xbf16>
    tpu.vector_store %arg4[%c0_5, %c0_6, %c0_7], %9 {strides = array<i32>} : memref<1x64x128xbf16, #tpu.memory_space<vmem>>, vector<1x64x128xbf16>,
    return
  }
  func.func @transform_0(%arg0: i32, %arg1: i32) -> (i32, i32, i32) {
    %c0_i32 = arith.constant 0 : i32
    %c0_i32_0 = arith.constant 0 : i32
    return %arg0, %c0_i32, %arg1 : i32, i32, i32
  }
  func.func @transform_1(%arg0: i32, %arg1: i32) -> (i32, i32) {
    %c0_i32 = arith.constant 0 : i32
    %c0_i32_0 = arith.constant 0 : i32
    %c0_i32_1 = arith.constant 0 : i32
    return %c0_i32, %c0_i32_0 : i32, i32
  }
  func.func @transform_2(%arg0: i32, %arg1: i32) -> (i32, i32, i32) {
    %c0_i32 = arith.constant 0 : i32
    %c0_i32_0 = arith.constant 0 : i32
    return %arg0, %c0_i32, %arg1 : i32, i32, i32
  }
}

</mosaic_0001>

<llo_original>
// kernel: tpu_custom_call.1
$region0: #{tpu_custom_call.1}
  #allocation0 [shape = 'u32[]', space=smem, size = 0x4, offset = 0x4, fixed_abs, tag = 'smem constant byte address 0x4 - core index']
  #allocation1 [shape = 'u32[144,128]{1,0:T(1,128)}', space=vmem, size = 0x12000, scoped, tag = 'internal scratch']
  %s0 = inlined_call_operand.hbm [shape: bf16[2,32,256], index: 0, kind: input, shape index: {}]
  %s1 = inlined_call_operand.vmem [shape: bf16[64,32], index: 1, kind: input, shape index: {}]
  %s2 = inlined_call_operand.hbm [shape: bf16[2,64,256], index: 2, kind: output, shape index: {}]
  %s3 = sld [smem:[#allocation0]]
  $region45: #{tpu_custom_call.1} parent=0
    _
  %s5 = ssub.s32 1, %s3
  %s6 = scalar_select 0, %s5, %s3
  $region1: #{tpu_custom_call.1} parent=0
    #allocation2 [shape = 'u8[16384]{0}', space=vmem, size = 0x4000, scoped, tag = 'input window, operand 0']
    #allocation3 [shape = 's32[2]{0}', space=sflag, size = 0x8, scoped, tag = 'scoped memory for tpu_custom_call.1']
    #allocation4 [shape = 's32[2]{0}', space=sflag, size = 0x8, scoped, tag = 'scoped memory for tpu_custom_call.1']
    #allocation5 [shape = 'u8[32768]{0}', space=vmem, size = 0x8000, scoped, tag = 'output window, operand 0']
    %7 = vsyncpa [#allocation3], 0
    %s8 = scalar_lea.sflag [#allocation3], 1
    %9 = vsyncpa %s8, 0
    %10 = vsyncpa [#allocation4], 0
    %s11 = scalar_lea.sflag [#allocation4], 1
    %12 = vsyncpa %s11, 0
    loop: start=0, step=1, limit=6
    $region2: #{tpu_custom_call.1} parent=1 // loop_pre_header
      _
    $region3: #{tpu_custom_call.1} parent=1 // loop_header
      %s14 = sphi 0, %s18
      %p15 = scmp.ge.s32.totalorder %s14, 6
      %s21 = sphi 0, %s33
      %s22 = sphi 0, %s29
      %s23 = sphi 0, %s21
      %s24 = sphi 0, %s22
      %s25 = sphi 0, %s23
      %s26 = sphi 0, %s24
      %s38 = sphi 0, %s40
      %s41 = sphi 0, %s38
      %s42 = sphi 0, %s41
      %s58 = sphi 0, %s42
      %s62 = sphi 0, %s62
      %s64 = sphi 0, %s62
      %s65 = sphi 0, %s64
      %s79 = sphi 0, %s65
      %s87 = sphi 0, %s89
      %s90 = sphi 0, %s87
      %s91 = sphi 0, %s90
      %s107 = sphi 0, %s91
    $region4: #{tpu_custom_call.1} parent=1 // loop_header_branch
      %17 = sbr.rel (%p15) target = $region8
    $region5: #{tpu_custom_call.1} parent=1 // loop_body
      %s19 = ssub.s32 %s14, 1
      %s20 = ssub.s32 %s14, 2
      %s27 = sadd.s32 1, %s22
      %p28 = scmp.ge.s32.totalorder %s27, 2
      %s29 = scalar_select %p28, 0, %s27
      %s30 = sadd.s32 1, %s21
      %s31 = scalar_select %p28, %s30, %s21
      %p32 = scmp.ge.s32.totalorder %s31, 2
      %s33 = scalar_select %p32, 0, %s31
      %s34 = ssub.s32 %s21, %s33
      %s35 = ssub.s32 %s22, %s29
      %s36 = sor.u32 %s34, %s35
      %p37 = scmp.eq.s32.totalorder %s36, 0
      %s39 = sadd.s32 %s38, 1
      %s40 = scalar_select %p37, %s38, %s39
      %p43 = pneg %p37
      %p44 = scmp.eq.s32.totalorder %s14, 3
      %p45 = por %p43, %p44
      %p46 = scmp.ne.s32.totalorder %s38, %s41
      %p47 = scmp.eq.s32.totalorder %s14, 0
      %p48 = por %p46, %p47
      %p49 = scmp.ne.s32.totalorder %s38, %s41
      %p50 = scmp.eq.s32.totalorder %s19, 3
      %p51 = por %p49, %p50
      %p52 = scmp.ne.s32.totalorder %s41, %s42
      %p53 = scmp.eq.s32.totalorder %s19, 0
      %p54 = por %p52, %p53
      %p55 = scmp.ne.s32.totalorder %s41, %s42
      %p56 = scmp.eq.s32.totalorder %s20, 3
      %p57 = por %p55, %p56
      %p59 = scmp.ne.s32.totalorder %s42, %s58
      %p60 = scmp.eq.s32.totalorder %s20, 0
      %p61 = por %p59, %p60
      %s63 = sadd.s32 %s62, 1
      %p66 = scmp.eq.s32.totalorder %s14, 3
      %p67 = scmp.ne.s32.totalorder %s62, %s64
      %p68 = scmp.eq.s32.totalorder %s14, 0
      %p69 = por %p67, %p68
      %p70 = scmp.ne.s32.totalorder %s62, %s64
      %p71 = scmp.eq.s32.totalorder %s19, 3
      %p72 = por %p70, %p71
      %p73 = scmp.ne.s32.totalorder %s64, %s65
      %p74 = scmp.eq.s32.totalorder %s19, 0
      %p75 = por %p73, %p74
      %p76 = scmp.ne.s32.totalorder %s64, %s65
      %p77 = scmp.eq.s32.totalorder %s20, 3
      %p78 = por %p76, %p77
      %p80 = scmp.ne.s32.totalorder %s65, %s79
      %p81 = scmp.eq.s32.totalorder %s20, 0
      %p82 = por %p80, %p81
      %s83 = ssub.s32 %s21, %s33
      %s84 = ssub.s32 %s22, %s29
      %s85 = sor.u32 %s83, %s84
      %p86 = scmp.eq.s32.totalorder %s85, 0
      %s88 = sadd.s32 %s87, 1
      %s89 = scalar_select %p86, %s87, %s88
      %p92 = pneg %p86
      %p93 = scmp.eq.s32.totalorder %s14, 3
      %p94 = por %p92, %p93
      %p95 = scmp.ne.s32.totalorder %s87, %s90
      %p96 = scmp.eq.s32.totalorder %s14, 0
      %p97 = por %p95, %p96
      %p98 = scmp.ne.s32.totalorder %s87, %s90
      %p99 = scmp.eq.s32.totalorder %s19, 3
      %p100 = por %p98, %p99
      %p101 = scmp.ne.s32.totalorder %s90, %s91
      %p102 = scmp.eq.s32.totalorder %s19, 0
      %p103 = por %p101, %p102
      %p104 = scmp.ne.s32.totalorder %s90, %s91
      %p105 = scmp.eq.s32.totalorder %s20, 3
      %p106 = por %p104, %p105
      %p108 = scmp.ne.s32.totalorder %s91, %s107
      %p109 = scmp.eq.s32.totalorder %s20, 0
      %p110 = por %p108, %p109
      %p111 = scmp.le.s32.totalorder 1, %s14
      %p112 = scmp.lt.s32.totalorder %s14, 5
      %p113 = pnand %p111, %p112
      %p114 = pneg %p113
      // Predicated region
      $region9: #{tpu_custom_call.1} parent=5 // pred_check
        _
      $region10: #{tpu_custom_call.1} parent=5 // pred_check_branch
        %116 = sbr.rel (%p113) target = $region12
      $region11: #{tpu_custom_call.1} parent=5 // pred_region
        %s117 = ssub.s32 %s14, 1
        // Predicated region
        $region13: #{tpu_custom_call.1} parent=11 // pred_check
          %p118 = pneg %p75
        $region14: #{tpu_custom_call.1} parent=11 // pred_check_branch
          %120 = sbr.rel (%p118) target = $region16
        $region15: #{tpu_custom_call.1} parent=11 // pred_region
          _
        $region16: #{tpu_custom_call.1} parent=11 // pred_fallthru
          _
      $region12: #{tpu_custom_call.1} parent=5 // pred_fallthru
        _
      %p121 = scmp.lt.s32.totalorder %s14, 4
      // Predicated region
      $region17: #{tpu_custom_call.1} parent=5 // pred_check
        %p122 = pneg %p121
      $region18: #{tpu_custom_call.1} parent=5 // pred_check_branch
        %124 = sbr.rel (%p122) target = $region20
      $region19: #{tpu_custom_call.1} parent=5 // pred_region
        // Predicated region
        $region21: #{tpu_custom_call.1} parent=19 // pred_check
          %p125 = pneg %p48
        $region22: #{tpu_custom_call.1} parent=19 // pred_check_branch
          %127 = sbr.rel (%p125) target = $region24
        $region23: #{tpu_custom_call.1} parent=19 // pred_region
          %s128 = sand.u32 %s38, 1
          %s129 = scalar_lea.sflag [#allocation3], %s128
          %s130 = sand.u32 %s38, 1
          %s131 = smul.addr %s130, 16
          %s132 = scalar_lea.vmem [#allocation2], %s131
          %s134 = ssub.s32 256, 256
          %135 = vsyncadd %s129, %s134
          %s136 = smul.addr %s21, 8
          %s137 = sadd.s32 %s22, %s136
          %s138 = smul.addr %s137, 64
          %s139 = scalar_lea.hbm %s0, %s138
          %s140 = sshll.u32 %s132, 4
          %s141 = int_to_ptr.vmem [resolvable:$true] %s140
          %146 = dma.hbm_to_vmem [thread:$0]  %s139, 256, %s141, %s129, 128, 64, 4
        $region24: #{tpu_custom_call.1} parent=19 // pred_fallthru
          _
      $region20: #{tpu_custom_call.1} parent=5 // pred_fallthru
        _
      %p147 = scmp.le.s32.totalorder 1, %s14
      %p148 = scmp.lt.s32.totalorder %s14, 5
      %p149 = pnand %p147, %p148
      %p150 = pneg %p149
      // Predicated region
      $region25: #{tpu_custom_call.1} parent=5 // pred_check
        _
      $region26: #{tpu_custom_call.1} parent=5 // pred_check_branch
        %152 = sbr.rel (%p149) target = $region28
      $region27: #{tpu_custom_call.1} parent=5 // pred_region
        %s153 = ssub.s32 %s14, 1
        %s154 = sand.u32 %s41, 1
        %s155 = scalar_lea.sflag [#allocation3], %s154
        %s156 = sand.u32 %s41, 1
        %s157 = smul.addr %s156, 16
        %s158 = scalar_lea.vmem [#allocation2], %s157
        // Predicated region
        $region29: #{tpu_custom_call.1} parent=27 // pred_check
          %p159 = pneg %p54
        $region30: #{tpu_custom_call.1} parent=27 // pred_check_branch
          %161 = sbr.rel (%p159) target = $region32
        $region31: #{tpu_custom_call.1} parent=27 // pred_region
          %162 = dma.done %s155, 256
        $region32: #{tpu_custom_call.1} parent=27 // pred_fallthru
          _
        %s163 = sand.u32 %s41, 1
        %s164 = scalar_lea.sflag [#allocation3], %s163
        %s165 = sand.u32 %s41, 1
        %s166 = smul.addr %s165, 16
        %s167 = scalar_lea.vmem [#allocation2], %s166
        %p168 = pneg %p54
        %p169 = pneg %p51
        %p170 = pneg %p75
        %p171 = pneg %p72
        %p172 = pneg %p103
        %p173 = pneg %p100
        %s174 = sand.u32 %s90, 1
        %s175 = scalar_lea.sflag [#allocation4], %s174
        %s176 = sand.u32 %s90, 1
        %s177 = smul.addr %s176, 32
        %s178 = scalar_lea.vmem [#allocation5], %s177
        %v180 = vld [vmem:[%s1] sm:$0xf]
        %v181 = vld [vmem:[%s1 + $0x4] sm:$0xf]
        %v182 = vld [vmem:[%s1 + $0x8] sm:$0xf]
        %v183 = vld [vmem:[%s1 + $0xc] sm:$0xf]
        %v184 = vld [vmem:[%s1 + $0x10] sm:$0xf]
        %v185 = vld [vmem:[%s1 + $0x14] sm:$0xf]
        %v186 = vld [vmem:[%s1 + $0x18] sm:$0xf]
        %v187 = vld [vmem:[%s1 + $0x1c] sm:$0xf]
        %v188 = vld [vmem:[%s158] sm:$0xf]
        %v189 = vld [vmem:[%s158 + $0x4] sm:$0xf]
        %v190 = vld [vmem:[%s158 + $0x8] sm:$0xf]
        %v191 = vld [vmem:[%s158 + $0xc] sm:$0xf]
        %v200 = vunpack.c.l.b16 %v180
        %v201 = vunpack.c.l.b16 %v181
        %v202 = vunpack.c.l.b16 %v182
        %v203 = vunpack.c.l.b16 %v183
        %v204 = vunpack.c.l.b16 %v184
        %v205 = vunpack.c.l.b16 %v185
        %v206 = vunpack.c.l.b16 %v186
        %v207 = vunpack.c.l.b16 %v187
        %v208 = vpack.c.b16 %v201, %v200
        %v209 = vpack.c.b16 %v203, %v202
        %v210 = vpack.c.b16 %v205, %v204
        %v211 = vpack.c.b16 %v207, %v206
        %v216 = vunpack.c.l.b16 %v188
        %v217 = vunpack.c.l.b16 %v189
        %v218 = vunpack.c.l.b16 %v190
        %v219 = vunpack.c.l.b16 %v191
        %v220 = vpack.c.b16 %v217, %v216
        %v221 = vpack.c.b16 %v219, %v218
        %vm224 = vcmask 261120
        %v226 = vsel %vm224, %v208, 0
        %v229 = vsel %vm224, %v209, 0
        %v232 = vsel %vm224, %v210, 0
        %v235 = vsel %vm224, %v211, 0
        %237 = vmatprep.subr.bf16.mxu0 0
        %238 = vmatpush1.bf16.msra.mxu0 0
        %239 = vmatprep.subr.bf16.mxu0 0
        %240 = vmatpush1.bf16.msra.mxu0 0
        %241 = vmatprep.subr.bf16.mxu0 0
        %242 = vmatpush1.bf16.msra.mxu0 0
        %243 = vmatprep.subr.bf16.mxu0 0
        %244 = vmatpush1.bf16.msra.mxu0 0
        %245 = vmatprep.subr.bf16.mxu0 0
        %246 = vmatpush1.bf16.msra.mxu0 0
        %247 = vmatprep.subr.bf16.mxu0 0
        %248 = vmatpush1.bf16.msra.mxu0 0
        %249 = vmatprep.subr.bf16.mxu0 0
        %250 = vmatpush1.bf16.msra.mxu0 %v221
        %251 = vmatprep.subr.bf16.mxu0 0
        %252 = vmatpush1.bf16.msra.mxu0 %v220
        %253 = vmatprep.subr.bf16.mxu0 0
        %254 = vmatpush2.bf16.msra.mxu0 0
        %255 = vmatprep.subr.bf16.mxu0 0
        %256 = vmatpush2.bf16.msra.mxu0 0
        %257 = vmatprep.subr.bf16.mxu0 0
        %258 = vmatpush2.bf16.msra.mxu0 0
        %259 = vmatprep.subr.bf16.mxu0 0
        %260 = vmatpush2.bf16.msra.mxu0 0
        %261 = vmatprep.subr.bf16.mxu0 0
        %262 = vmatpush2.bf16.msra.mxu0 0
        %263 = vmatprep.subr.bf16.mxu0 0
        %264 = vmatpush2.bf16.msra.mxu0 0
        %265 = vmatprep.subr.bf16.mxu0 0
        %266 = vmatpush2.bf16.msra.mxu0 0
        %267 = vmatprep.subr.bf16.mxu0 0
        %268 = vmatpush2.bf16.msra.mxu0 0
        %269 = vmatprep.mubr.bf16.mxu0 0
        %270 = vmatmul.mubr.bf16.gmra.mxu0 %v226
        %v271 = vpop.f32.mrf.mxu0
        %v272 = vadd.f32 0.0, %v271
        %v273 = vpop.f32.mrf.mxu0
        %v274 = vpop.f32.mrf.mxu0
        %v275 = vadd.f32 0.0, %v274
        %v276 = vpop.f32.mrf.mxu0
        %277 = vmatprep.mubr.bf16.mxu0 0
        %278 = vmatmul.mubr.bf16.gmra.mxu0 %v229
        %v279 = vpop.f32.mrf.mxu0
        %v280 = vadd.f32 0.0, %v279
        %v281 = vpop.f32.mrf.mxu0
        %v282 = vpop.f32.mrf.mxu0
        %v283 = vadd.f32 0.0, %v282
        %v284 = vpop.f32.mrf.mxu0
        %285 = vmatprep.mubr.bf16.mxu0 0
        %286 = vmatmul.mubr.bf16.gmra.mxu0 %v232
        %v287 = vpop.f32.mrf.mxu0
        %v288 = vadd.f32 0.0, %v287
        %v289 = vpop.f32.mrf.mxu0
        %v290 = vpop.f32.mrf.mxu0
        %v291 = vadd.f32 0.0, %v290
        %v292 = vpop.f32.mrf.mxu0
        %293 = vmatprep.mubr.bf16.mxu0 0
        %294 = vmatmul.mubr.bf16.gmra.mxu0 %v235
        %v295 = vpop.f32.mrf.mxu0
        %v296 = vadd.f32 0.0, %v295
        %v297 = vpop.f32.mrf.mxu0
        %v298 = vpop.f32.mrf.mxu0
        %v299 = vadd.f32 0.0, %v298
        %v300 = vpop.f32.mrf.mxu0
        %301 = vdwg.mxu0
        %v302 = vmax.f32 %v272, 0.0
        %v303 = vmax.f32 %v275, 0.0
        %v304 = vmax.f32 %v280, 0.0
        %v305 = vmax.f32 %v283, 0.0
        %v306 = vmax.f32 %v288, 0.0
        %v307 = vmax.f32 %v291, 0.0
        %v308 = vmax.f32 %v296, 0.0
        %v309 = vmax.f32 %v299, 0.0
        %v310 = vpack.c.bf16 %v303, %v302
        %v311 = vpack.c.bf16 %v305, %v304
        %v312 = vpack.c.bf16 %v307, %v306
        %v313 = vpack.c.bf16 %v309, %v308
        %v318 = vunpack.c.l.b16 %v310
        %v319 = vunpack.c.h.b16 %v310
        %v320 = vunpack.c.l.b16 %v311
        %v321 = vunpack.c.h.b16 %v311
        %v322 = vunpack.c.l.b16 %v312
        %v323 = vunpack.c.h.b16 %v312
        %v324 = vunpack.c.l.b16 %v313
        %v325 = vunpack.c.h.b16 %v313
        %v326 = vpack.c.b16 %v318, %v318
        %v327 = vpack.c.b16 %v319, %v319
        %v328 = vpack.c.b16 %v320, %v320
        %v329 = vpack.c.b16 %v321, %v321
        %v330 = vpack.c.b16 %v322, %v322
        %v331 = vpack.c.b16 %v323, %v323
        %v332 = vpack.c.b16 %v324, %v324
        %v333 = vpack.c.b16 %v325, %v325
        %342 = vst [vmem:[%s178] sm:$0xf] %v326
        %343 = vst [vmem:[%s178 + $0x4] sm:$0xf] %v327
        %344 = vst [vmem:[%s178 + $0x8] sm:$0xf] %v328
        %345 = vst [vmem:[%s178 + $0xc] sm:$0xf] %v329
        %346 = vst [vmem:[%s178 + $0x10] sm:$0xf] %v330
        %347 = vst [vmem:[%s178 + $0x14] sm:$0xf] %v331
        %348 = vst [vmem:[%s178 + $0x18] sm:$0xf] %v332
        %349 = vst [vmem:[%s178 + $0x1c] sm:$0xf] %v333
        %s350 = sand.u32 %s90, 1
        %s351 = scalar_lea.sflag [#allocation4], %s350
        %s352 = sand.u32 %s90, 1
        %s353 = smul.addr %s352, 32
        %s354 = scalar_lea.vmem [#allocation5], %s353
        // Predicated region
        $region33: #{tpu_custom_call.1} parent=27 // pred_check
          %p355 = pneg %p100
        $region34: #{tpu_custom_call.1} parent=27 // pred_check_branch
          %357 = sbr.rel (%p355) target = $region36
        $region35: #{tpu_custom_call.1} parent=27 // pred_region
          %s359 = ssub.s32 512, 512
          %360 = vsyncadd %s351, %s359
          %s361 = smul.addr %s23, 16
          %s362 = sadd.s32 %s24, %s361
          %s363 = smul.addr %s362, 64
          %s364 = scalar_lea.hbm %s2, %s363
          %s365 = sshll.u32 %s354, 4
          %s366 = int_to_ptr.vmem [resolvable:$true] %s365
          %371 = dma.vmem_to_hbm [thread:$0]  %s366, 512, %s364, %s351, 64, 128, 4
        $region36: #{tpu_custom_call.1} parent=27 // pred_fallthru
          _
      $region28: #{tpu_custom_call.1} parent=5 // pred_fallthru
        _
      %p372 = scmp.le.s32.totalorder 2, %s14
      // Predicated region
      $region37: #{tpu_custom_call.1} parent=5 // pred_check
        %p373 = pneg %p372
      $region38: #{tpu_custom_call.1} parent=5 // pred_check_branch
        %375 = sbr.rel (%p373) target = $region40
      $region39: #{tpu_custom_call.1} parent=5 // pred_region
        %s376 = ssub.s32 %s14, 2
        // Predicated region
        $region41: #{tpu_custom_call.1} parent=39 // pred_check
          %p377 = pneg %p106
        $region42: #{tpu_custom_call.1} parent=39 // pred_check_branch
          %379 = sbr.rel (%p377) target = $region44
        $region43: #{tpu_custom_call.1} parent=39 // pred_region
          %s380 = sand.u32 %s91, 1
          %s381 = scalar_lea.sflag [#allocation4], %s380
          %s382 = sand.u32 %s91, 1
          %s383 = smul.addr %s382, 32
          %s384 = scalar_lea.vmem [#allocation5], %s383
          %385 = dma.done %s381, 512
        $region44: #{tpu_custom_call.1} parent=39 // pred_fallthru
          _
      $region40: #{tpu_custom_call.1} parent=5 // pred_fallthru
        _
    $region6: #{tpu_custom_call.1} parent=1 // loop_footer
      %s18 = sadd.s32 1, %s14
    $region7: #{tpu_custom_call.1} parent=1 // loop_footer_branch
      %13 = sbr.rel target = $region3
    $region8: #{tpu_custom_call.1} parent=1 // loop_exit
      _
    %386 = vsyncpa [#allocation3], 1
    %s387 = scalar_lea.sflag [#allocation3], 1
    %388 = vsyncpa %s387, 1
    %389 = vsyncpa [#allocation4], 1
    %s390 = scalar_lea.sflag [#allocation4], 1
    %391 = vsyncpa %s390, 1

</llo_original>
